<compile_context>
chip_gen: v5e
topology: v5e:2x2
jax: 0.10.0
libtpu: 0.0.40
codegen_flags: <defaults>
</compile_context>

<pallas_src>
import functools
import math

import jax
import jax.numpy as jnp
from jax import lax
from jax.experimental import pallas as pl
from jax.experimental.pallas import tpu as pltpu


# ----------------------------- constant-exponent power helpers -----------------------------

def _is_simple_exponent(p):
    p = float(p)
    if p in (0.0, 1.0, 2.0):
        return True
    ap = abs(p)
    return (2.0 * ap) == round(2.0 * ap) and ap <= 8.0


def _pow_const(x, p):
    """x ** p for a Python-constant exponent.

    Integer / half-integer exponents are rewritten as rsqrt / sqrt / reciprocal plus
    multiplies (single EUP op + VALU filler) instead of the generic pow lowering
    (exp(p * log x) = 2 EUP ops).  Falls back to jnp.power otherwise."""
    p = float(p)
    if p == 0.0:
        return jnp.ones_like(x)
    if p == 1.0:
        return x
    if p == 2.0:
        return x * x
    ap = abs(p)
    if (2.0 * ap) == round(2.0 * ap) and ap <= 8.0:
        n = int(ap)                       # integer part of |p|
        half = (ap - n) == 0.5
        if p > 0.0:
            frac = jnp.sqrt(x) if half else None
            base = x if n > 0 else None
        else:
            if half:
                frac = lax.rsqrt(x)                       # x^-0.5  (1 EUP op)
                base = frac * frac if n > 0 else None     # x^-1 via multiply
            else:
                frac = None
                base = pl.reciprocal(x, approx=False)     # x^-1
        result = frac
        acc = base
        k = n
        while k > 0:                       # integer power via repeated squaring (VALU)
            if k & 1:
                result = acc if result is None else result * acc
            k >>= 1
            if k:
                acc = acc * acc
        return result
    return jnp.power(x, p)


# ----------------------------- in-kernel math helpers -----------------------------

def _exp_t_k(u, t):
    if t == 1.0:
        return jnp.exp(u)
    p = 1.0 / (1.0 - t)
    base = jnp.maximum(1.0 + (1.0 - t) * u, 0.0)
    out = _pow_const(base, p)
    if t < 1.0 and not _is_simple_exponent(p):
        # generic pow(0, positive) relies on exp(p*log 0) == 0; make it explicit.
        out = jnp.where(base > 0.0, out, 0.0)
    return out


def _norm_fixed_point_k(act, t, num_iters, axis):
    # t > 1.0
    mu = jnp.max(act, axis=axis, keepdims=True)
    na0 = act - mu

    def body(_, na):
        z = jnp.sum(_exp_t_k(na, t), axis=axis, keepdims=True)
        return na0 * _pow_const(z, 1.0 - t)

    na = lax.fori_loop(0, num_iters, body, na0, unroll=True)
    z = jnp.sum(_exp_t_k(na, t), axis=axis, keepdims=True)
    # -log_t(1/Z, t) == (Z^(t-1) - 1) / (t - 1): avoids a reciprocal and a divide.
    return (_pow_const(z, t - 1.0) - 1.0) * (1.0 / (t - 1.0)) + mu


def _norm_binary_search_k(act, t, num_iters, axis):
    # t < 1.0
    mu = jnp.max(act, axis=axis, keepdims=True)
    na = act - mu
    eff_dim = jnp.sum((na > -1.0 / (1.0 - t)).astype(jnp.float32),
                      axis=axis, keepdims=True)
    lower = jnp.zeros_like(mu)
    # -log_t(1/d, t) == (d^(t-1) - 1) / (t - 1)
    upper = (_pow_const(eff_dim, t - 1.0) - 1.0) * (1.0 / (t - 1.0)) * jnp.ones_like(lower)

    def body(_, carry):
        lo, up = carry
        lp = (up + lo) * 0.5
        sp = jnp.sum(_exp_t_k(na - lp, t), axis=axis, keepdims=True)
        upd = (sp < 1.0).astype(jnp.float32)
        lo = lo * upd + (1.0 - upd) * lp
        up = up * (1.0 - upd) + upd * lp
        return (lo, up)

    lower, upper = lax.fori_loop(0, num_iters, body, (lower, upper), unroll=True)
    return (upper + lower) * 0.5 + mu


def _tempered_softmax_k(act, t, num_iters, axis):
    if t == 1.0:
        m = jnp.max(act, axis=axis, keepdims=True)
        e = jnp.exp(act - m)
        return e * pl.reciprocal(jnp.sum(e, axis=axis, keepdims=True), approx=False)
    if t > 1.0:
        nc = _norm_fixed_point_k(act, t, num_iters, axis)
    else:
        nc = _norm_binary_search_k(act, t, num_iters, axis)
    return _exp_t_k(act - nc, t)


def _epilogue_terms(probs, t1, inv_1mt1):
    # Single full-tile power for the epilogue:
    #   log_t(p, t1) = (p^(1-t1) - 1)/(1-t1)   and   p^(2-t1) = p * p^(1-t1)
    if t1 == 1.0:
        return jnp.log(probs), probs
    p_pow = _pow_const(probs, 1.0 - t1)
    return (p_pow - 1.0) * inv_1mt1, probs * p_pow


# ----------------------------- Pallas kernels -----------------------------

def _bitempered_kernel_cmajor(labels_ref, logits_ref, out_ref, *, t1, t2, num_iters,
                              on_val, off_val, const_row, inv_2mt1, inv_1mt1,
                              batch, tile_b, mask_tail):
    # Class-major: logits_ref (C, TB), labels_ref (1, TB) int32, out_ref (1, TB).
    act = logits_ref[...].astype(jnp.float32)               # (C, TB)
    lbl = labels_ref[...]                                    # (1, TB)
    num_classes, tb = act.shape

    probs = _tempered_softmax_k(act, t2, num_iters, axis=0)  # (C, TB)
    logt_p, pow_p = _epilogue_terms(probs, t1, inv_1mt1)

    # Fused label-selected + full-column reduction:
    #   sum_j onehot_j * log_t(p_j) = sum_j (off + (on-off)*sel_j) * log_t(p_j)
    class_ids = lax.broadcasted_iota(jnp.int32, (num_classes, tb), 0)
    sel = (class_ids == lbl).astype(jnp.float32)              # (C, TB)
    w = off_val + (on_val - off_val) * sel
    weighted_logt = jnp.sum(w * logt_p, axis=0, keepdims=True)   # (1, TB)
    sum_pow_p = jnp.sum(pow_p, axis=0, keepdims=True)            # (1, TB)

    loss = const_row - weighted_logt + inv_2mt1 * sum_pow_p       # (1, TB)

    if mask_tail:
        col = lax.broadcasted_iota(jnp.int32, (1, tb), 1) + pl.program_id(0) * tile_b
        loss = jnp.where(col < batch, loss, 0.0)

    out_ref[...] = loss                                           # lane-dense store


def _bitempered_kernel_rmajor(labels_ref, logits_ref, out_ref, *, t1, t2, num_iters,
                              on_val, off_val, const_row, inv_2mt1, inv_1mt1):
    # Row-major (C multiple of 128): logits_ref (TB, C), labels_ref (TB, 1), out_ref (TB, 1).
    act = logits_ref[...].astype(jnp.float32)               # (TB, C)
    lbl = labels_ref[...]                                    # (TB, 1)
    tb, num_classes = act.shape

    probs = _tempered_softmax_k(act, t2, num_iters, axis=-1)
    logt_p, pow_p = _epilogue_terms(probs, t1, inv_1mt1)

    class_ids = lax.broadcasted_iota(jnp.int32, (tb, num_classes), 1)
    sel = (class_ids == lbl).astype(jnp.float32)
    w = off_val + (on_val - off_val) * sel
    loss = (const_row
            - jnp.sum(w * logt_p, axis=-1, keepdims=True)
            + inv_2mt1 * jnp.sum(pow_p, axis=-1, keepdims=True))
    out_ref[...] = loss


# ----------------------------- wrapper helpers -----------------------------

def _vmem_limit_bytes():
    # Half of the part's physical VMEM, capped at 64 MiB (v5e/v6e: 128 MiB physical,
    # v7x: 64 MiB physical -> 32 MiB limit).
    try:
        info = pltpu.get_tpu_info()
        cap = int(getattr(info, "vmem_capacity_bytes", 128 << 20))
    except Exception:  # pragma: no cover - conservative fallback off-TPU
        cap = 64 << 20
    return int(min(cap // 2, 64 << 20))


def _pick_tile_b_cmajor(batch, max_tile=1024):
    # Working set per tile is only a handful of (<=round8(C), tile_b) f32 buffers, so the
    # cap is about vreg pressure of the unrolled loop, not VMEM.  Ensure >=2 grid steps
    # when the batch allows it so v7x's second TensorCore is used.
    if batch <= 128:
        return batch                      # single full-extent block
    half = ((pl.cdiv(batch, 2) + 127) // 128) * 128
    tb = min(max_tile, half)
    return max(128, (tb // 128) * 128)


def _pick_tile_b_rmajor(batch, num_classes, target_vmem_bytes, max_tile=2048):
    # ~16 live f32 (tile_b, C) buffers (double-buffered input + loop temporaries).
    bytes_per_row = 16 * num_classes * 4
    tb = max(8, target_vmem_bytes // bytes_per_row)
    half = ((pl.cdiv(batch, 2) + 7) // 8) * 8          # >= 2 tiles for v7x when possible
    tb = min(tb, max_tile, max(8, half), ((batch + 7) // 8) * 8)
    return max(8, (tb // 8) * 8)


def _log_t_scalar(u, t):
    if t == 1.0:
        return math.log(u)
    return (u ** (1.0 - t) - 1.0) / (1.0 - t)


def _loss_constants(C, t1, smoothing):
    # Smoothed one-hot takes exactly two values -> fold its log_t / pow terms into one
    # Python constant per row; no transcendentals on the labels tensor in-kernel.
    if smoothing > 0.0:
        on_val = 1.0 - smoothing                    # (1 - s*C/(C-1)) + s/(C-1)
        off_val = smoothing / (C - 1)
    else:
        on_val, off_val = 1.0, 0.0
    inv_2mt1 = 1.0 / (2.0 - t1)
    inv_1mt1 = 0.0 if t1 == 1.0 else 1.0 / (1.0 - t1)
    eps = 1e-10
    const_row = (on_val * _log_t_scalar(on_val + eps, t1)
                 + (C - 1) * off_val * _log_t_scalar(off_val + eps, t1)
                 - (on_val ** (2.0 - t1) + (C - 1) * off_val ** (2.0 - t1)) * inv_2mt1)
    return on_val, off_val, inv_2mt1, inv_1mt1, const_row


# ----------------------------- public entry point -----------------------------

def bi_tempered_loss_pallas(logits, labels, *, t1, t2, smoothing=0.0,
                            num_iters=5, tile_b=None):
    """logits: f32 [B, C]; labels: int [B]. Returns scalar mean loss (reduction='mean')."""
    B, C = logits.shape
    on_val, off_val, inv_2mt1, inv_1mt1, const_row = _loss_constants(C, t1, smoothing)
    common = dict(t1=float(t1), t2=float(t2), num_iters=int(num_iters),
                  on_val=float(on_val), off_val=float(off_val),
                  const_row=float(const_row), inv_2mt1=float(inv_2mt1),
                  inv_1mt1=float(inv_1mt1))
    vmem_limit = _vmem_limit_bytes()
    # EUP-bound kernel: ~(num_iters + 2) full-tile powers.
    cost = pl.CostEstimate(
        flops=int(12 * (num_iters + 3) * B * C),
        transcendentals=int((num_iters + 2) * B * C),
        bytes_accessed=int(B * C * 4 + 2 * B * 4))

    if C % 128 != 0:
        # ---- class-major (lane-dense) path: batch on the lane axis ----
        if tile_b is None:
            tile_b = _pick_tile_b_cmajor(B)
        tile_b = min(tile_b, B) if B <= 128 else tile_b
        num_tiles = pl.cdiv(B, tile_b)
        B_pad = num_tiles * tile_b

        # One XLA transpose pass in the wrapper (kernel is EUP-bound, not HBM-bound;
        # an in-kernel (tile_b, C)->(C, tile_b) transpose is avoided for lowering safety).
        logits_cm = jnp.transpose(logits.astype(jnp.float32))      # (C, B)
        labels_row = labels.astype(jnp.int32).reshape(1, B)

        kernel = functools.partial(_bitempered_kernel_cmajor, batch=B, tile_b=tile_b,
                                   mask_tail=(B % tile_b != 0), **common)
        per_example = pl.pallas_call(
            kernel,
            out_shape=jax.ShapeDtypeStruct((1, B_pad), jnp.float32),
            grid_spec=pltpu.PrefetchScalarGridSpec(
                num_scalar_prefetch=0,
                grid=(num_tiles,),
                in_specs=[
                    pl.BlockSpec((1, tile_b), lambda i: (0, i)),
                    pl.BlockSpec((C, tile_b), lambda i: (0, i)),
                ],
                out_specs=pl.BlockSpec((1, tile_b), lambda i: (0, i)),
            ),
            compiler_params=pltpu.CompilerParams(
                dimension_semantics=("parallel",),
                vmem_limit_bytes=vmem_limit),
            cost_estimate=cost,
        )(labels_row, logits_cm)
        # Ragged tail columns are zeroed in-kernel -> plain sum is exact.
        return jnp.sum(per_example) * (1.0 / B)

    # ---- row-major path (C is a multiple of 128; classes already lane-dense) ----
    if tile_b is None:
        tile_b = _pick_tile_b_rmajor(B, C, vmem_limit // 2)
    num_tiles = pl.cdiv(B, tile_b)
    labels2d = labels.astype(jnp.int32).reshape(B, 1)

    kernel = functools.partial(_bitempered_kernel_rmajor, **common)
    per_example = pl.pallas_call(
        kernel,
        out_shape=jax.ShapeDtypeStruct((B, 1), jnp.float32),
        grid_spec=pltpu.PrefetchScalarGridSpec(
            num_scalar_prefetch=0,
            grid=(num_tiles,),
            in_specs=[
                pl.BlockSpec((tile_b, 1), lambda i: (i, 0)),
                pl.BlockSpec((tile_b, C), lambda i: (i, 0)),
            ],
            out_specs=pl.BlockSpec((tile_b, 1), lambda i: (i, 0)),
        ),
        compiler_params=pltpu.CompilerParams(
            dimension_semantics=("parallel",),
            vmem_limit_bytes=vmem_limit),
        cost_estimate=cost,
    )(labels2d, logits)
    # Ragged tail rows in the last block map to out-of-bounds output rows (writes dropped).
    return jnp.sum(per_example) * (1.0 / B)


# ----------------------------- pure-JAX reference (faithful port of the torch code) -----------------------------

def _ref_log_t(u, t):
    if t == 1.0:
        return jnp.log(u)
    return (jnp.power(u, 1.0 - t) - 1.0) / (1.0 - t)


def _ref_exp_t(u, t):
    if t == 1.0:
        return jnp.exp(u)
    return jnp.power(jnp.maximum(1.0 + (1.0 - t) * u, 0.0), 1.0 / (1.0 - t))


def _ref_norm_fixed_point(act, t, num_iters):
    mu = jnp.max(act, axis=-1, keepdims=True)
    na0 = act - mu
    na = na0
    for _ in range(num_iters):
        z = jnp.sum(_ref_exp_t(na, t), axis=-1, keepdims=True)
        na = na0 * jnp.power(z, 1.0 - t)
    z = jnp.sum(_ref_exp_t(na, t), axis=-1, keepdims=True)
    return -_ref_log_t(1.0 / z, t) + mu


def _ref_norm_binary_search(act, t, num_iters):
    mu = jnp.max(act, axis=-1, keepdims=True)
    na = act - mu
    eff_dim = jnp.sum((na > -1.0 / (1.0 - t)).astype(jnp.int32),
                      axis=-1, keepdims=True).astype(act.dtype)
    lower = jnp.zeros_like(mu)
    upper = -_ref_log_t(1.0 / eff_dim, t) * jnp.ones_like(lower)
    for _ in range(num_iters):
        lp = (upper + lower) / 2.0
        sp = jnp.sum(_ref_exp_t(na - lp, t), axis=-1, keepdims=True)
        upd = (sp < 1.0).astype(act.dtype)
        lower = lower * upd + (1.0 - upd) * lp
        upper = upper * (1.0 - upd) + upd * lp
    return (upper + lower) / 2.0 + mu


def _ref_tempered_softmax(act, t, num_iters):
    if t == 1.0:
        return jax.nn.softmax(act, axis=-1)
    if t < 1.0:
        nc = _ref_norm_binary_search(act, t, num_iters)
    else:
        nc = _ref_norm_fixed_point(act, t, num_iters)
    return _ref_exp_t(act - nc, t)


def _reference(logits, labels, *, t1, t2, smoothing=0.0, num_iters=5):
    B, C = logits.shape
    onehot = jax.nn.one_hot(labels, C, dtype=jnp.float32)
    if smoothing > 0.0:
        onehot = (1.0 - smoothing * C / (C - 1)) * onehot + smoothing / (C - 1)
    probs = _ref_tempered_softmax(logits.astype(jnp.float32), t2, num_iters)
    lv = (onehot * _ref_log_t(onehot + 1e-10, t1)
          - onehot * _ref_log_t(probs, t1)
          - jnp.power(onehot, 2.0 - t1) / (2.0 - t1)
          + jnp.power(probs, 2.0 - t1) / (2.0 - t1))
    return jnp.mean(jnp.sum(lv, axis=-1))


# ----------------------------- main -----------------------------

if __name__ == "__main__":
    # BiTemperedLogisticLoss(t1=0.8, t2=1.4, smoothing=0.05)
    t1, t2, smoothing = 0.8, 1.4, 0.05

    key = jax.random.PRNGKey(0)
    k1, k2 = jax.random.split(key)
    B, C = 16, 5                      # small demo: 16 examples, 5 classes
    logits = 2.0 * jax.random.normal(k1, (B, C), dtype=jnp.float32)
    labels = jax.random.randint(k2, (B,), 0, C, dtype=jnp.int32)

    loss = bi_tempered_loss_pallas(logits, labels, t1=t1, t2=t2,
                                   smoothing=smoothing, num_iters=5)
    loss = jax.block_until_ready(loss)

    ref = _reference(logits, labels, t1=t1, t2=t2, smoothing=smoothing, num_iters=5)
    assert jnp.allclose(loss, ref, atol=1e-3, rtol=1e-3), (loss, ref)

    # TODO(synk): the custom ComputeNormalization.backward (escort gradient) is not
    # implemented; this kernel covers the module's forward pass only.
    print("KERNEL_OK")
</pallas_src>

<mosaic_0001>
module attributes {stable_mosaic.version = 11 : i64} {
  func.func @_bitempered_kernel_cmajor(%arg0: i32, %arg1: memref<1x16xi32, #tpu.memory_space<vmem>>, %arg2: memref<5x16xf32, #tpu.memory_space<vmem>>, %arg3: memref<1x16xf32, #tpu.memory_space<vmem>>) attributes {dimension_semantics = [#tpu.dimension_semantics<parallel>], iteration_bounds = array<i64: 1>, scalar_prefetch = 0 : i64, scratch_operands = 0 : i64, tpu.core_type = #tpu.core_type<tc>, window_params = [{transform_indices = @transform_0, window_bounds = array<i64: 1, 16>}, {transform_indices = @transform_1, window_bounds = array<i64: 5, 16>}, {transform_indices = @transform_2, window_bounds = array<i64: 1, 16>}]} {
    %c0 = arith.constant 0 : index
    %c0_0 = arith.constant 0 : index
    %0 = vector.load %arg2[%c0, %c0_0] : memref<5x16xf32, #tpu.memory_space<vmem>>, vector<5x16xf32>
    %c0_1 = arith.constant 0 : index
    %c0_2 = arith.constant 0 : index
    %1 = vector.load %arg1[%c0_1, %c0_2] : memref<1x16xi32, #tpu.memory_space<vmem>>, vector<1x16xi32>
    %cst = arith.constant dense<0xFF800000> : vector<16xf32>
    %2 = vector.multi_reduction <maximumf>, %0, %cst [0] : vector<5x16xf32> to vector<16xf32>
    %3 = vector.shape_cast %2 : vector<16xf32> to vector<1x16xf32>
    %4 = vector.broadcast %3 : vector<1x16xf32> to vector<5x16xf32>
    %5 = arith.subf %0, %4 : vector<5x16xf32>
    %c0_i32 = arith.constant 0 : i32
    %cst_3 = arith.constant -4.000000e-01 : f32
    %6 = vector.broadcast %cst_3 : f32 to vector<5x16xf32>
    %7 = arith.mulf %6, %5 : vector<5x16xf32>
    %cst_4 = arith.constant 1.000000e+00 : f32
    %8 = vector.broadcast %cst_4 : f32 to vector<5x16xf32>
    %9 = arith.addf %8, %7 : vector<5x16xf32>
    %cst_5 = arith.constant 0.000000e+00 : f32
    %10 = vector.broadcast %cst_5 : f32 to vector<5x16xf32>
    %11 = arith.maximumf %9, %10 : vector<5x16xf32>
    %cst_6 = arith.constant -2.500000e+00 : f32
    %12 = vector.broadcast %cst_6 : f32 to vector<5x16xf32>
    %13 = math.powf %11, %12 : vector<5x16xf32>
    %cst_7 = arith.constant dense<0.000000e+00> : vector<16xf32>
    %14 = vector.multi_reduction <add>, %13, %cst_7 [0] : vector<5x16xf32> to vector<16xf32>
    %15 = vector.shape_cast %14 : vector<16xf32> to vector<1x16xf32>
    %cst_8 = arith.constant -4.000000e-01 : f32
    %16 = vector.broadcast %cst_8 : f32 to vector<1x16xf32>
    %17 = math.powf %15, %16 : vector<1x16xf32>
    %18 = vector.broadcast %17 : vector<1x16xf32> to vector<5x16xf32>
    %19 = arith.mulf %5, %18 : vector<5x16xf32>
    %c1_i32 = arith.constant 1 : i32
    %cst_9 = arith.constant -4.000000e-01 : f32
    %20 = vector.broadcast %cst_9 : f32 to vector<5x16xf32>
    %21 = arith.mulf %20, %19 : vector<5x16xf32>
    %cst_10 = arith.constant 1.000000e+00 : f32
    %22 = vector.broadcast %cst_10 : f32 to vector<5x16xf32>
    %23 = arith.addf %22, %21 : vector<5x16xf32>
    %cst_11 = arith.constant 0.000000e+00 : f32
    %24 = vector.broadcast %cst_11 : f32 to vector<5x16xf32>
    %25 = arith.maximumf %23, %24 : vector<5x16xf32>
    %cst_12 = arith.constant -2.500000e+00 : f32
    %26 = vector.broadcast %cst_12 : f32 to vector<5x16xf32>
    %27 = math.powf %25, %26 : vector<5x16xf32>
    %cst_13 = arith.constant dense<0.000000e+00> : vector<16xf32>
    %28 = vector.multi_reduction <add>, %27, %cst_13 [0] : vector<5x16xf32> to vector<16xf32>
    %29 = vector.shape_cast %28 : vector<16xf32> to vector<1x16xf32>
    %cst_14 = arith.constant -4.000000e-01 : f32
    %30 = vector.broadcast %cst_14 : f32 to vector<1x16xf32>
    %31 = math.powf %29, %30 : vector<1x16xf32>
    %32 = vector.broadcast %31 : vector<1x16xf32> to vector<5x16xf32>
    %33 = arith.mulf %5, %32 : vector<5x16xf32>
    %c2_i32 = arith.constant 2 : i32
    %cst_15 = arith.constant -4.000000e-01 : f32
    %34 = vector.broadcast %cst_15 : f32 to vector<5x16xf32>
    %35 = arith.mulf %34, %33 : vector<5x16xf32>
    %cst_16 = arith.constant 1.000000e+00 : f32
    %36 = vector.broadcast %cst_16 : f32 to vector<5x16xf32>
    %37 = arith.addf %36, %35 : vector<5x16xf32>
    %cst_17 = arith.constant 0.000000e+00 : f32
    %38 = vector.broadcast %cst_17 : f32 to vector<5x16xf32>
    %39 = arith.maximumf %37, %38 : vector<5x16xf32>
    %cst_18 = arith.constant -2.500000e+00 : f32
    %40 = vector.broadcast %cst_18 : f32 to vector<5x16xf32>
    %41 = math.powf %39, %40 : vector<5x16xf32>
    %cst_19 = arith.constant dense<0.000000e+00> : vector<16xf32>
    %42 = vector.multi_reduction <add>, %41, %cst_19 [0] : vector<5x16xf32> to vector<16xf32>
    %43 = vector.shape_cast %42 : vector<16xf32> to vector<1x16xf32>
    %cst_20 = arith.constant -4.000000e-01 : f32
    %44 = vector.broadcast %cst_20 : f32 to vector<1x16xf32>
    %45 = math.powf %43, %44 : vector<1x16xf32>
    %46 = vector.broadcast %45 : vector<1x16xf32> to vector<5x16xf32>
    %47 = arith.mulf %5, %46 : vector<5x16xf32>
    %c3_i32 = arith.constant 3 : i32
    %cst_21 = arith.constant -4.000000e-01 : f32
    %48 = vector.broadcast %cst_21 : f32 to vector<5x16xf32>
    %49 = arith.mulf %48, %47 : vector<5x16xf32>
    %cst_22 = arith.constant 1.000000e+00 : f32
    %50 = vector.broadcast %cst_22 : f32 to vector<5x16xf32>
    %51 = arith.addf %50, %49 : vector<5x16xf32>
    %cst_23 = arith.constant 0.000000e+00 : f32
    %52 = vector.broadcast %cst_23 : f32 to vector<5x16xf32>
    %53 = arith.maximumf %51, %52 : vector<5x16xf32>
    %cst_24 = arith.constant -2.500000e+00 : f32
    %54 = vector.broadcast %cst_24 : f32 to vector<5x16xf32>
    %55 = math.powf %53, %54 : vector<5x16xf32>
    %cst_25 = arith.constant dense<0.000000e+00> : vector<16xf32>
    %56 = vector.multi_reduction <add>, %55, %cst_25 [0] : vector<5x16xf32> to vector<16xf32>
    %57 = vector.shape_cast %56 : vector<16xf32> to vector<1x16xf32>
    %cst_26 = arith.constant -4.000000e-01 : f32
    %58 = vector.broadcast %cst_26 : f32 to vector<1x16xf32>
    %59 = math.powf %57, %58 : vector<1x16xf32>
    %60 = vector.broadcast %59 : vector<1x16xf32> to vector<5x16xf32>
    %61 = arith.mulf %5, %60 : vector<5x16xf32>
    %c4_i32 = arith.constant 4 : i32
    %cst_27 = arith.constant -4.000000e-01 : f32
    %62 = vector.broadcast %cst_27 : f32 to vector<5x16xf32>
    %63 = arith.mulf %62, %61 : vector<5x16xf32>
    %cst_28 = arith.constant 1.000000e+00 : f32
    %64 = vector.broadcast %cst_28 : f32 to vector<5x16xf32>
    %65 = arith.addf %64, %63 : vector<5x16xf32>
    %cst_29 = arith.constant 0.000000e+00 : f32
    %66 = vector.broadcast %cst_29 : f32 to vector<5x16xf32>
    %67 = arith.maximumf %65, %66 : vector<5x16xf32>
    %cst_30 = arith.constant -2.500000e+00 : f32
    %68 = vector.broadcast %cst_30 : f32 to vector<5x16xf32>
    %69 = math.powf %67, %68 : vector<5x16xf32>
    %cst_31 = arith.constant dense<0.000000e+00> : vector<16xf32>
    %70 = vector.multi_reduction <add>, %69, %cst_31 [0] : vector<5x16xf32> to vector<16xf32>
    %71 = vector.shape_cast %70 : vector<16xf32> to vector<1x16xf32>
    %cst_32 = arith.constant -4.000000e-01 : f32
    %72 = vector.broadcast %cst_32 : f32 to vector<1x16xf32>
    %73 = math.powf %71, %72 : vector<1x16xf32>
    %74 = vector.broadcast %73 : vector<1x16xf32> to vector<5x16xf32>
    %75 = arith.mulf %5, %74 : vector<5x16xf32>
    %cst_33 = arith.constant -4.000000e-01 : f32
    %76 = vector.broadcast %cst_33 : f32 to vector<5x16xf32>
    %77 = arith.mulf %76, %75 : vector<5x16xf32>
    %cst_34 = arith.constant 1.000000e+00 : f32
    %78 = vector.broadcast %cst_34 : f32 to vector<5x16xf32>
    %79 = arith.addf %78, %77 : vector<5x16xf32>
    %cst_35 = arith.constant 0.000000e+00 : f32
    %80 = vector.broadcast %cst_35 : f32 to vector<5x16xf32>
    %81 = arith.maximumf %79, %80 : vector<5x16xf32>
    %cst_36 = arith.constant -2.500000e+00 : f32
    %82 = vector.broadcast %cst_36 : f32 to vector<5x16xf32>
    %83 = math.powf %81, %82 : vector<5x16xf32>
    %cst_37 = arith.constant dense<0.000000e+00> : vector<16xf32>
    %84 = vector.multi_reduction <add>, %83, %cst_37 [0] : vector<5x16xf32> to vector<16xf32>
    %85 = vector.shape_cast %84 : vector<16xf32> to vector<1x16xf32>
    %cst_38 = arith.constant 4.000000e-01 : f32
    %86 = vector.broadcast %cst_38 : f32 to vector<1x16xf32>
    %87 = math.powf %85, %86 : vector<1x16xf32>
    %cst_39 = arith.constant 1.000000e+00 : f32
    %88 = vector.broadcast %cst_39 : f32 to vector<1x16xf32>
    %89 = arith.subf %87, %88 : vector<1x16xf32>
    %cst_40 = arith.constant 2.500000e+00 : f32
    %90 = vector.broadcast %cst_40 : f32 to vector<1x16xf32>
    %91 = arith.mulf %89, %90 : vector<1x16xf32>
    %92 = arith.addf %91, %3 : vector<1x16xf32>
    %93 = vector.broadcast %92 : vector<1x16xf32> to vector<5x16xf32>
    %94 = arith.subf %0, %93 : vector<5x16xf32>
    %cst_41 = arith.constant -4.000000e-01 : f32
    %95 = vector.broadcast %cst_41 : f32 to vector<5x16xf32>
    %96 = arith.mulf %95, %94 : vector<5x16xf32>
    %cst_42 = arith.constant 1.000000e+00 : f32
    %97 = vector.broadcast %cst_42 : f32 to vector<5x16xf32>
    %98 = arith.addf %97, %96 : vector<5x16xf32>
    %cst_43 = arith.constant 0.000000e+00 : f32
    %99 = vector.broadcast %cst_43 : f32 to vector<5x16xf32>
    %100 = arith.maximumf %98, %99 : vector<5x16xf32>
    %cst_44 = arith.constant -2.500000e+00 : f32
    %101 = vector.broadcast %cst_44 : f32 to vector<5x16xf32>
    %102 = math.powf %100, %101 : vector<5x16xf32>
    %cst_45 = arith.constant 2.000000e-01 : f32
    %103 = vector.broadcast %cst_45 : f32 to vector<5x16xf32>
    %104 = math.powf %102, %103 : vector<5x16xf32>
    %cst_46 = arith.constant 1.000000e+00 : f32
    %105 = vector.broadcast %cst_46 : f32 to vector<5x16xf32>
    %106 = arith.subf %104, %105 : vector<5x16xf32>
    %cst_47 = arith.constant 5.000000e+00 : f32
    %107 = vector.broadcast %cst_47 : f32 to vector<5x16xf32>
    %108 = arith.mulf %106, %107 : vector<5x16xf32>
    %109 = arith.mulf %102, %104 : vector<5x16xf32>
    %110 = tpu.iota {dimensions = array<i32: 0>} : vector<5x16xi32>
    %111 = vector.broadcast %1 : vector<1x16xi32> to vector<5x16xi32>
    %112 = arith.cmpi eq, %110, %111 : vector<5x16xi32>
    %113 = arith.extui %112 : vector<5x16xi1> to vector<5x16xi32>
    %114 = arith.sitofp %113 : vector<5x16xi32> to vector<5x16xf32>
    %cst_48 = arith.constant 9.375000e-01 : f32
    %115 = vector.broadcast %cst_48 : f32 to vector<5x16xf32>
    %116 = arith.mulf %115, %114 : vector<5x16xf32>
    %cst_49 = arith.constant 1.250000e-02 : f32
    %117 = vector.broadcast %cst_49 : f32 to vector<5x16xf32>
    %118 = arith.addf %117, %116 : vector<5x16xf32>
    %119 = arith.mulf %118, %108 : vector<5x16xf32>
    %cst_50 = arith.constant dense<0.000000e+00> : vector<16xf32>
    %120 = vector.multi_reduction <add>, %119, %cst_50 [0] : vector<5x16xf32> to vector<16xf32>
    %121 = vector.shape_cast %120 : vector<16xf32> to vector<1x16xf32>
    %cst_51 = arith.constant dense<0.000000e+00> : vector<16xf32>
    %122 = vector.multi_reduction <add>, %109, %cst_51 [0] : vector<5x16xf32> to vector<16xf32>
    %123 = vector.shape_cast %122 : vector<16xf32> to vector<1x16xf32>
    %cst_52 = arith.constant -9.953420e-01 : f32
    %124 = vector.broadcast %cst_52 : f32 to vector<1x16xf32>
    %125 = arith.subf %124, %121 : vector<1x16xf32>
    %cst_53 = arith.constant 0.833333313 : f32
    %126 = vector.broadcast %cst_53 : f32 to vector<1x16xf32>
    %127 = arith.mulf %126, %123 : vector<1x16xf32>
    %128 = arith.addf %125, %127 : vector<1x16xf32>
    %c0_54 = arith.constant 0 : index
    %c0_55 = arith.constant 0 : index
    %129 = vector.load %arg3[%c0_54, %c0_55] : memref<1x16xf32, #tpu.memory_space<vmem>>, vector<1x16xf32>
    tpu.vector_store %arg3[%c0_54, %c0_55], %128 {strides = array<i32>} : memref<1x16xf32, #tpu.memory_space<vmem>>, vector<1x16xf32>,
    return
  }
  func.func @transform_0(%arg0: i32) -> (i32, i32) {
    %c0_i32 = arith.constant 0 : i32
    %c0_i32_0 = arith.constant 0 : i32
    return %c0_i32, %arg0 : i32, i32
  }
  func.func @transform_1(%arg0: i32) -> (i32, i32) {
    %c0_i32 = arith.constant 0 : i32
    %c0_i32_0 = arith.constant 0 : i32
    return %c0_i32, %arg0 : i32, i32
  }
  func.func @transform_2(%arg0: i32) -> (i32, i32) {
    %c0_i32 = arith.constant 0 : i32
    %c0_i32_0 = arith.constant 0 : i32
    return %c0_i32, %arg0 : i32, i32
  }
}

</mosaic_0001>

<llo_original>
// kernel: tpu_custom_call.1
$region0: #{tpu_custom_call.1}
  #allocation0 [shape = 'u32[]', space=smem, size = 0x4, offset = 0x4, fixed_abs, tag = 'smem constant byte address 0x4 - core index']
  #allocation1 [shape = 'u32[72,128]{1,0:T(1,128)}', space=vmem, size = 0x9000, scoped, tag = 'internal scratch']
  %s0 = inlined_call_operand.hbm [shape: s32[1,16], index: 0, kind: input, shape index: {}]
  %s1 = inlined_call_operand.hbm [shape: f32[5,16], index: 1, kind: input, shape index: {}]
  %s2 = inlined_call_operand.hbm [shape: f32[1,16], index: 2, kind: output, shape index: {}]
  %s3 = sld [smem:[#allocation0]]
  $region26: #{tpu_custom_call.1} parent=0
    _
  %s5 = ssub.s32 1, %s3
  %s6 = scalar_select 0, %s5, %s3
  $region1: #{tpu_custom_call.1} parent=0
    #allocation2 [shape = 'u8[512]{0}', space=vmem, size = 0x400, scoped, tag = 'input window, operand 0, single buffered']
    #allocation3 [shape = 's32[1]{0}', space=sflag, size = 0x4, scoped, tag = 'scoped memory for tpu_custom_call.1']
    #allocation4 [shape = 's32[1]{0}', space=sflag, size = 0x4, scoped, tag = 'scoped memory for tpu_custom_call.1']
    #allocation5 [shape = 'u8[4096]{0}', space=vmem, size = 0x1000, scoped, tag = 'input window, operand 1, single buffered']
    #allocation6 [shape = 's32[1]{0}', space=sflag, size = 0x4, scoped, tag = 'scoped memory for tpu_custom_call.1']
    #allocation7 [shape = 'u8[512]{0}', space=vmem, size = 0x400, scoped, tag = 'output window, operand 0, single buffered']
    %7 = vsyncpa [#allocation3], 0
    %8 = vsyncpa [#allocation6], 0
    %9 = vsyncpa [#allocation4], 0
    // Predicated region
    $region2: #{tpu_custom_call.1} parent=1 // pred_check
      _
    $region3: #{tpu_custom_call.1} parent=1 // pred_check_branch
      %11 = sbr.rel (0) target = $region5
    $region4: #{tpu_custom_call.1} parent=1 // pred_region
      %13 = vsyncadd [#allocation3], 0
      %s15 = sshll.u32 %s0, 4
      %s16 = int_to_ptr.hbm [resolvable:$true] %s15
      %s17 = sshll.u32 [#allocation2], 4
      %s18 = int_to_ptr.vmem [resolvable:$true] %s17
      %20 = dma.hbm_to_vmem [thread:$0]  %s16, 16, %s18, [#allocation3]
    $region5: #{tpu_custom_call.1} parent=1 // pred_fallthru
      _
    // Predicated region
    $region6: #{tpu_custom_call.1} parent=1 // pred_check
      _
    $region7: #{tpu_custom_call.1} parent=1 // pred_check_branch
      %22 = sbr.rel (0) target = $region9
    $region8: #{tpu_custom_call.1} parent=1 // pred_region
      %24 = vsyncadd [#allocation6], 0
      %s26 = sshll.u32 %s1, 4
      %s27 = int_to_ptr.hbm [resolvable:$true] %s26
      %s28 = sshll.u32 [#allocation5], 4
      %s29 = int_to_ptr.vmem [resolvable:$true] %s28
      %31 = dma.hbm_to_vmem [thread:$0]  %s27, 128, %s29, [#allocation6]
    $region9: #{tpu_custom_call.1} parent=1 // pred_fallthru
      _
    // Predicated region
    $region10: #{tpu_custom_call.1} parent=1 // pred_check
      _
    $region11: #{tpu_custom_call.1} parent=1 // pred_check_branch
      %33 = sbr.rel (0) target = $region13
    $region12: #{tpu_custom_call.1} parent=1 // pred_region
      %35 = dma.done [#allocation3], 16
    $region13: #{tpu_custom_call.1} parent=1 // pred_fallthru
      _
    // Predicated region
    $region14: #{tpu_custom_call.1} parent=1 // pred_check
      _
    $region15: #{tpu_custom_call.1} parent=1 // pred_check_branch
      %37 = sbr.rel (0) target = $region17
    $region16: #{tpu_custom_call.1} parent=1 // pred_region
      %39 = dma.done [#allocation6], 128
    $region17: #{tpu_custom_call.1} parent=1 // pred_fallthru
      _
    %v40 = vld [vmem:[#allocation5] sm:$0x1f]
    %v41 = vld [vmem:[#allocation2] sm:$0x1]
    %vm42 = vcmask 126976
    %v43 = vsel %vm42, %v40, -inf
    %v44 = vrot.slane %v43, 4
    %v45 = vmax.f32 %v43, %v44
    %v46 = vrot.slane %v45, 2
    %v47 = vmax.f32 %v45, %v46
    %v48 = vrot.slane %v47, 1
    %v49 = vmax.f32 %v47, %v48
    %v50 = vsub.f32 %v40, %v49
    %v51 = vmul.f32 %v50, -0.4
    %v52 = vadd.f32 %v51, 1.0
    %v53 = vmax.f32 %v52, 0.0
    %v54 = vpow.f32 %v53, -2.5
    %v55 = vsel %vm42, %v54, 0.0
    %v56 = vrot.slane %v55, 4
    %v57 = vadd.f32 %v55, %v56
    %v58 = vrot.slane %v57, 2
    %v59 = vadd.f32 %v57, %v58
    %v60 = vrot.slane %v59, 1
    %v61 = vadd.f32 %v59, %v60
    %v62 = vpow.f32 %v61, -0.4
    %v63 = vmul.f32 %v50, %v62
    %v64 = vmul.f32 %v63, -0.4
    %v65 = vadd.f32 %v64, 1.0
    %v66 = vmax.f32 %v65, 0.0
    %v67 = vpow.f32 %v66, -2.5
    %v68 = vsel %vm42, %v67, 0.0
    %v69 = vrot.slane %v68, 4
    %v70 = vadd.f32 %v68, %v69
    %v71 = vrot.slane %v70, 2
    %v72 = vadd.f32 %v70, %v71
    %v73 = vrot.slane %v72, 1
    %v74 = vadd.f32 %v72, %v73
    %v75 = vpow.f32 %v74, -0.4
    %v76 = vmul.f32 %v50, %v75
    %v77 = vmul.f32 %v76, -0.4
    %v78 = vadd.f32 %v77, 1.0
    %v79 = vmax.f32 %v78, 0.0
    %v80 = vpow.f32 %v79, -2.5
    %v81 = vsel %vm42, %v80, 0.0
    %v82 = vrot.slane %v81, 4
    %v83 = vadd.f32 %v81, %v82
    %v84 = vrot.slane %v83, 2
    %v85 = vadd.f32 %v83, %v84
    %v86 = vrot.slane %v85, 1
    %v87 = vadd.f32 %v85, %v86
    %v88 = vpow.f32 %v87, -0.4
    %v89 = vmul.f32 %v50, %v88
    %v90 = vmul.f32 %v89, -0.4
    %v91 = vadd.f32 %v90, 1.0
    %v92 = vmax.f32 %v91, 0.0
    %v93 = vpow.f32 %v92, -2.5
    %v94 = vsel %vm42, %v93, 0.0
    %v95 = vrot.slane %v94, 4
    %v96 = vadd.f32 %v94, %v95
    %v97 = vrot.slane %v96, 2
    %v98 = vadd.f32 %v96, %v97
    %v99 = vrot.slane %v98, 1
    %v100 = vadd.f32 %v98, %v99
    %v101 = vpow.f32 %v100, -0.4
    %v102 = vmul.f32 %v50, %v101
    %v103 = vmul.f32 %v102, -0.4
    %v104 = vadd.f32 %v103, 1.0
    %v105 = vmax.f32 %v104, 0.0
    %v106 = vpow.f32 %v105, -2.5
    %v107 = vsel %vm42, %v106, 0.0
    %v108 = vrot.slane %v107, 4
    %v109 = vadd.f32 %v107, %v108
    %v110 = vrot.slane %v109, 2
    %v111 = vadd.f32 %v109, %v110
    %v112 = vrot.slane %v111, 1
    %v113 = vadd.f32 %v111, %v112
    %v114 = vpow.f32 %v113, -0.4
    %v115 = vmul.f32 %v50, %v114
    %v116 = vmul.f32 %v115, -0.4
    %v117 = vadd.f32 %v116, 1.0
    %v118 = vmax.f32 %v117, 0.0
    %v119 = vpow.f32 %v118, -2.5
    %v120 = vsel %vm42, %v119, 0.0
    %v121 = vrot.slane %v120, 4
    %v122 = vadd.f32 %v120, %v121
    %v123 = vrot.slane %v122, 2
    %v124 = vadd.f32 %v122, %v123
    %v125 = vrot.slane %v124, 1
    %v126 = vadd.f32 %v124, %v125
    %v127 = vpow.f32 %v126, 0.4
    %v128 = vsub.f32 %v127, 1.0
    %v129 = vmul.f32 %v128, 2.5
    %v130 = vadd.f32 %v129, %v49
    %v131 = vsub.f32 %v40, %v130
    %v132 = vmul.f32 %v131, -0.4
    %v133 = vadd.f32 %v132, 1.0
    %v134 = vmax.f32 %v133, 0.0
    %v135 = vpow.f32 %v134, -2.5
    %v136 = vpow.f32 %v135, 0.2
    %v137 = vsub.f32 %v136, 1.0
    %v138 = vmul.f32 %v137, 5.0
    %v139 = vmul.f32 %v135, %v136
    %v140 = vlaneseq
    %v141 = vshrl.u32 %v140, 7
    %v142 = vperm.slane %v41, 0
    %vm143 = vcmp.eq.s32.totalorder %v141, %v142
    %v144 = vsel %vm143, 1, 0
    %v145 = vcvt.s32.f32 %v144
    %v146 = vmul.f32 %v145, 0.9375
    %v147 = vadd.f32 %v146, 0.0125
    %v148 = vmul.f32 %v147, %v138
    %v149 = vsel %vm42, %v148, 0.0
    %v150 = vrot.slane %v149, 4
    %v151 = vadd.f32 %v149, %v150
    %v152 = vrot.slane %v151, 2
    %v153 = vadd.f32 %v151, %v152
    %v154 = vrot.slane %v153, 1
    %v155 = vadd.f32 %v153, %v154
    %v156 = vsel %vm42, %v139, 0.0
    %v157 = vrot.slane %v156, 4
    %v158 = vadd.f32 %v156, %v157
    %v159 = vrot.slane %v158, 2
    %v160 = vadd.f32 %v158, %v159
    %v161 = vrot.slane %v160, 1
    %v162 = vadd.f32 %v160, %v161
    %v163 = vsub.f32 -0.995342, %v155
    %v164 = vmul.f32 %v162, 0.8333333
    %v165 = vadd.f32 %v163, %v164
    %vm166 = vcmask 122880
    %167 = vst.msk [vmem:[#allocation7] sm:$0x1] %vm166, %v165
    // Predicated region
    $region18: #{tpu_custom_call.1} parent=1 // pred_check
      _
    $region19: #{tpu_custom_call.1} parent=1 // pred_check_branch
      %169 = sbr.rel (0) target = $region21
    $region20: #{tpu_custom_call.1} parent=1 // pred_region
      %171 = vsyncadd [#allocation4], 0
      %s173 = sshll.u32 [#allocation7], 4
      %s174 = int_to_ptr.vmem [resolvable:$true] %s173
      %s175 = sshll.u32 %s2, 4
      %s176 = int_to_ptr.hbm [resolvable:$true] %s175
      %178 = dma.vmem_to_hbm [thread:$0]  %s174, 16, %s176, [#allocation4]
    $region21: #{tpu_custom_call.1} parent=1 // pred_fallthru
      _
    // Predicated region
    $region22: #{tpu_custom_call.1} parent=1 // pred_check
      _
    $region23: #{tpu_custom_call.1} parent=1 // pred_check_branch
      %180 = sbr.rel (0) target = $region25
    $region24: #{tpu_custom_call.1} parent=1 // pred_region
      %182 = dma.done [#allocation4], 16
    $region25: #{tpu_custom_call.1} parent=1 // pred_fallthru
      _
    %183 = vsyncpa [#allocation3], 1
    %184 = vsyncpa [#allocation6], 1
    %185 = vsyncpa [#allocation4], 1

</llo_original>
